<compile_context>
chip_gen: v7x
topology: tpu7x:2x2x1
jax: 0.10.0
libtpu: 0.0.40
codegen_flags: <defaults>
</compile_context>

<pallas_src>
import jax
import jax.numpy as jnp
from jax.experimental import pallas as pl
from jax.experimental.pallas import tpu as pltpu


def _cdiv(a, b):
    return (a + b - 1) // b


def _round_up(x, m):
    return _cdiv(x, m) * m


def _linear_kernel_f32(x_ref, w_ref, b_ref, o_ref):
    # grid = (Mgrid, Ngrid, Kgrid) with k innermost.  The output block index
    # (i, j) is constant across k, so o_ref stays resident in VMEM and doubles
    # as the f32 accumulator.  Bias is folded into the k==0 init.
    @pl.when(pl.program_id(2) == 0)
    def _():
        o_ref[...] = jnp.broadcast_to(b_ref[...], o_ref.shape)

    # w_ref is a (tk, tn) tile of the pre-transposed (K, N) weight: natural
    # row-major MXU matmul, no in-kernel transpose.
    o_ref[...] += jnp.dot(x_ref[...], w_ref[...],
                          preferred_element_type=jnp.float32)


def _linear_kernel_acc(x_ref, w_ref, b_ref, o_ref, acc_ref):
    # Variant with an explicit f32 accumulator, for non-f32 output dtypes.
    @pl.when(pl.program_id(2) == 0)
    def _():
        acc_ref[...] = jnp.broadcast_to(b_ref[...], acc_ref.shape)

    acc_ref[...] += jnp.dot(x_ref[...], w_ref[...],
                            preferred_element_type=jnp.float32)

    @pl.when(pl.program_id(2) == pl.num_programs(2) - 1)
    def _():
        o_ref[...] = acc_ref[...].astype(o_ref.dtype)


def _balanced_tile(dim, max_tile, align):
    """Pick a tile <= ~max_tile that balances work across grid steps.

    Returns (tile, grid).  When a single step suffices the full dim is used as
    the block (always legal: block == full array dim).  Otherwise the tile is
    align-rounded so every block satisfies the (8, 128) layout rule and the
    tail block is only marginally smaller (no 1.7x padded-work blowups).
    """
    if dim <= max_tile:
        return dim, 1
    grid = _cdiv(dim, max_tile)
    tile = _round_up(_cdiv(dim, grid), align)
    return tile, _cdiv(dim, tile)


def my_linear(x, weight, bias, *, out_dtype=None, tm_max=512, tn_max=1024,
              tile_budget_bytes=None):
    """Forward of MyLinear: y = x @ weight.T + bias.

    x:      (M, K)   f32, or bf16 for the fast MXU path (f32 accumulation is
                     kept either way; bf16 inputs are strongly recommended on
                     v5e where the MXU peak is bf16-only).
    weight: (N, K)   PyTorch (out_features, in_features) layout — NOT transposed.
    bias:   (N,)
    """
    M, K = x.shape
    N, K2 = weight.shape
    assert K == K2, "in_features mismatch"
    assert bias.shape == (N,)
    out_dtype = jnp.dtype(out_dtype or x.dtype)

    # ---- Generation-aware VMEM budget (v5e/v6e: 128 MiB, v7x: 64 MiB) ------
    try:
        vmem_cap = int(pltpu.get_tpu_info().vmem_capacity_bytes)
    except Exception:
        vmem_cap = 64 * 1024 * 1024  # conservative fallback (v7x-sized)
    if tile_budget_bytes is None:
        tile_budget_bytes = int(vmem_cap * 0.6)      # double-buffered tiles
    vmem_limit_bytes = max(int(vmem_cap * 0.75), tile_budget_bytes + (8 << 20))
    vmem_limit_bytes = min(vmem_limit_bytes, vmem_cap - (4 << 20))

    bx = jnp.dtype(x.dtype).itemsize
    bw = jnp.dtype(weight.dtype).itemsize
    bo = out_dtype.itemsize

    # Sublane packing alignment for the M tile: 8 (f32) / 16 (bf16) / 32 (int8).
    m_align = max(8, 32 // bx)
    tm, m_grid = _balanced_tile(M, tm_max, m_align)
    tn, n_grid = _balanced_tile(N, tn_max, 128)

    # Fixed per-(i, j) VMEM cost: double-buffered output block, optional f32
    # accumulator scratch, (tiny) bias block.
    need_acc = out_dtype != jnp.dtype(jnp.float32)
    fixed = 2 * tm * tn * bo + (tm * tn * 4 if need_acc else 0) + 2 * tn * 4

    # K tiling: collapse to a single k step whenever the (tm, K) x-panel and
    # (K, tn) W-panel fit the budget (no x re-streaming, no extra accumulate
    # passes, no K padding).  Otherwise split K into balanced 128-aligned
    # chunks; the K tail must then be zero-padded (garbage K would corrupt
    # the reduction).
    per_k = 2 * tm * bx + 2 * tn * bw            # bytes per unit of tk (2x buffered)
    if fixed + K * per_k <= tile_budget_bytes:
        tk, k_grid, Kp = K, 1, K
    else:
        tk_fit = max(128, ((tile_budget_bytes - fixed) // per_k) // 128 * 128)
        k_grid = _cdiv(K, tk_fit)
        tk = min(tk_fit, _round_up(_cdiv(K, k_grid), 128))
        Kp = _round_up(K, tk)
        k_grid = Kp // tk

    # One-time wrapper relayout: weight -> (K, N).  Only K is ever zero-padded;
    # ragged M / N are handled by cdiv grids + partial tail blocks (their OOB
    # contents never reach a stored output element).
    w_t = jnp.transpose(weight)                  # (K, N)
    if Kp != K:
        x = jnp.pad(x, ((0, 0), (0, Kp - K)))
        w_t = jnp.pad(w_t, ((0, Kp - K), (0, 0)))
    b2 = bias.astype(jnp.float32).reshape(1, N)

    grid = (m_grid, n_grid, k_grid)
    in_specs = [
        pl.BlockSpec((tm, tk), lambda i, j, k: (i, k)),   # x panel
        pl.BlockSpec((tk, tn), lambda i, j, k: (k, j)),   # W^T panel (K, N)
        pl.BlockSpec((1, tn), lambda i, j, k: (0, j)),    # bias row
    ]
    out_spec = pl.BlockSpec((tm, tn), lambda i, j, k: (i, j))

    if need_acc:
        kernel = _linear_kernel_acc
        scratch_shapes = [pltpu.VMEM((tm, tn), jnp.float32)]
    else:
        kernel = _linear_kernel_f32
        scratch_shapes = []

    # NOTE: when the whole problem fits one (i, j) block only one TensorCore is
    # used on v7x; splitting further would just add per-step overhead for tiny
    # problems, so we leave it.
    return pl.pallas_call(
        kernel,
        out_shape=jax.ShapeDtypeStruct((M, N), out_dtype),
        grid_spec=pltpu.PrefetchScalarGridSpec(
            num_scalar_prefetch=0,
            grid=grid,
            in_specs=in_specs,
            out_specs=out_spec,
            scratch_shapes=scratch_shapes,
        ),
        compiler_params=pltpu.CompilerParams(
            dimension_semantics=("parallel", "parallel", "arbitrary"),
            vmem_limit_bytes=vmem_limit_bytes,
        ),
    )(x, w_t, b2)


if __name__ == "__main__":
    key = jax.random.PRNGKey(0)
    kx, kw, kb, kx2, kw2, kb2 = jax.random.split(key, 6)

    # --- Small test, shapes consistent with the module: batch=8, in=32, out=16.
    # (PyTorch's torch.Tensor() params are uninitialized; we use synthetic init.)
    M, K, N = 8, 32, 16
    x = jax.random.normal(kx, (M, K), dtype=jnp.float32)
    weight = jax.random.normal(kw, (N, K), dtype=jnp.float32) * 0.1
    bias = jax.random.normal(kb, (N,), dtype=jnp.float32) * 0.1

    y = my_linear(x, weight, bias)
    jax.block_until_ready(y)
    y_ref = x @ weight.T + bias
    assert y.shape == (M, N)
    assert jnp.allclose(y, y_ref, atol=1e-4, rtol=1e-4)

    # --- Non-f32 output path (exercises the scratch-accumulator kernel).
    y_bf16 = my_linear(x, weight, bias, out_dtype=jnp.bfloat16)
    jax.block_until_ready(y_bf16)
    assert jnp.allclose(y_bf16.astype(jnp.float32), y_ref, atol=5e-2, rtol=5e-2)

    # --- bf16-input fast path (f32 accumulation kept inside the kernel).
    y_bf_in = my_linear(x.astype(jnp.bfloat16), weight.astype(jnp.bfloat16), bias,
                        out_dtype=jnp.float32)
    jax.block_until_ready(y_bf_in)
    assert jnp.allclose(y_bf_in, y_ref, atol=5e-2, rtol=5e-2)

    # --- Medium, ragged shapes: partial M/N tail blocks, single-k fast path.
    M2, K2_, N2 = 300, 1000, 384
    x2 = jax.random.normal(kx2, (M2, K2_), dtype=jnp.float32)
    w2 = jax.random.normal(kw2, (N2, K2_), dtype=jnp.float32) * 0.05
    b2 = jax.random.normal(kb2, (N2,), dtype=jnp.float32) * 0.1

    y2 = my_linear(x2, w2, b2)
    jax.block_until_ready(y2)
    y2_ref = x2 @ w2.T + b2
    assert y2.shape == (M2, N2)
    assert jnp.allclose(y2, y2_ref, atol=2e-2, rtol=2e-2)

    # --- Force the split-K path (tiny tile budget => Kgrid > 1, zero-padded K
    #     tail, K-innermost accumulation into the resident output block).
    y3 = my_linear(x2, w2, b2, tile_budget_bytes=4 * 1024 * 1024)
    jax.block_until_ready(y3)
    assert jnp.allclose(y3, y2_ref, atol=2e-2, rtol=2e-2)

    print("KERNEL_OK")
</pallas_src>

<mosaic_0001>
module attributes {stable_mosaic.version = 11 : i64} {
  func.func @_linear_kernel_f32(%arg0: i32, %arg1: i32, %arg2: i32, %arg3: memref<8x32xf32, #tpu.memory_space<vmem>>, %arg4: memref<32x16xf32, #tpu.memory_space<vmem>>, %arg5: memref<1x16xf32, #tpu.memory_space<vmem>>, %arg6: memref<8x16xf32, #tpu.memory_space<vmem>>) attributes {dimension_semantics = [#tpu.dimension_semantics<parallel>, #tpu.dimension_semantics<parallel>, #tpu.dimension_semantics<arbitrary>], iteration_bounds = array<i64: 1, 1, 1>, scalar_prefetch = 0 : i64, scratch_operands = 0 : i64, tpu.core_type = #tpu.core_type<tc>, window_params = [{transform_indices = @transform_0, window_bounds = array<i64: 8, 32>}, {transform_indices = @transform_1, window_bounds = array<i64: 32, 16>}, {transform_indices = @transform_2, window_bounds = array<i64: 1, 16>}, {transform_indices = @transform_3, window_bounds = array<i64: 8, 16>}]} {
    %c0_i32 = arith.constant 0 : i32
    %0 = arith.cmpi eq, %arg2, %c0_i32 : i32
    %1 = arith.extui %0 : i1 to i32
    %c0_i32_0 = arith.constant 0 : i32
    %2 = arith.cmpi ne, %1, %c0_i32_0 : i32
    scf.if %2 {
      %c0_8 = arith.constant 0 : index
      %c0_9 = arith.constant 0 : index
      %9 = vector.load %arg5[%c0_8, %c0_9] : memref<1x16xf32, #tpu.memory_space<vmem>>, vector<1x16xf32>
      %10 = vector.shape_cast %9 : vector<1x16xf32> to vector<1x16xf32>
      %11 = vector.broadcast %10 : vector<1x16xf32> to vector<8x16xf32>
      %c0_10 = arith.constant 0 : index
      %c0_11 = arith.constant 0 : index
      %12 = vector.load %arg6[%c0_10, %c0_11] : memref<8x16xf32, #tpu.memory_space<vmem>>, vector<8x16xf32>
      tpu.vector_store %arg6[%c0_10, %c0_11], %11 {strides = array<i32>} : memref<8x16xf32, #tpu.memory_space<vmem>>, vector<8x16xf32>,
    } else {
    }
    %c0 = arith.constant 0 : index
    %c0_1 = arith.constant 0 : index
    %3 = vector.load %arg6[%c0, %c0_1] : memref<8x16xf32, #tpu.memory_space<vmem>>, vector<8x16xf32>
    %c0_2 = arith.constant 0 : index
    %c0_3 = arith.constant 0 : index
    %4 = vector.load %arg3[%c0_2, %c0_3] : memref<8x32xf32, #tpu.memory_space<vmem>>, vector<8x32xf32>
    %c0_4 = arith.constant 0 : index
    %c0_5 = arith.constant 0 : index
    %5 = vector.load %arg4[%c0_4, %c0_5] : memref<32x16xf32, #tpu.memory_space<vmem>>, vector<32x16xf32>
    %cst = arith.constant dense<0.000000e+00> : vector<8x16xf32>
    %6 = tpu.matmul %4, %5, %cst {dimension_numbers = #tpu.dot_dimension_numbers<[1], [0], [0], [1], [0, 0, 1, 1], [], []>} : vector<8x32xf32>, vector<32x16xf32>, vector<8x16xf32> -> vector<8x16xf32>
    %7 = arith.addf %3, %6 : vector<8x16xf32>
    %c0_6 = arith.constant 0 : index
    %c0_7 = arith.constant 0 : index
    %8 = vector.load %arg6[%c0_6, %c0_7] : memref<8x16xf32, #tpu.memory_space<vmem>>, vector<8x16xf32>
    tpu.vector_store %arg6[%c0_6, %c0_7], %7 {strides = array<i32>} : memref<8x16xf32, #tpu.memory_space<vmem>>, vector<8x16xf32>,
    return
  }
  func.func @transform_0(%arg0: i32, %arg1: i32, %arg2: i32) -> (i32, i32) {
    %c0_i32 = arith.constant 0 : i32
    return %arg0, %arg2 : i32, i32
  }
  func.func @transform_1(%arg0: i32, %arg1: i32, %arg2: i32) -> (i32, i32) {
    %c0_i32 = arith.constant 0 : i32
    return %arg2, %arg1 : i32, i32
  }
  func.func @transform_2(%arg0: i32, %arg1: i32, %arg2: i32) -> (i32, i32) {
    %c0_i32 = arith.constant 0 : i32
    %c0_i32_0 = arith.constant 0 : i32
    return %c0_i32, %arg1 : i32, i32
  }
  func.func @transform_3(%arg0: i32, %arg1: i32, %arg2: i32) -> (i32, i32) {
    %c0_i32 = arith.constant 0 : i32
    return %arg0, %arg1 : i32, i32
  }
}

</mosaic_0001>

<llo_original>
// kernel: tpu_custom_call.1
$region0: #{tpu_custom_call.1}
  #allocation0 [shape = 'u32[]', space=smem, size = 0x4, offset = 0x4, fixed_abs, tag = 'smem constant byte address 0x4 - core index']
  #allocation1 [shape = 'u32[144,128]{1,0:T(1,128)}', space=vmem, size = 0x12000, scoped, tag = 'internal scratch']
  %s0 = inlined_call_operand.vmem [shape: f32[8,32], index: 0, kind: input, shape index: {}]
  %s1 = inlined_call_operand.vmem [shape: f32[32,16], index: 1, kind: input, shape index: {}]
  %s2 = inlined_call_operand.vmem [shape: f32[1,16], index: 2, kind: input, shape index: {}]
  %s3 = inlined_call_operand.hbm [shape: f32[8,16], index: 3, kind: output, shape index: {}]
  %s4 = sld [smem:[#allocation0]]
  $region26: #{tpu_custom_call.1} parent=0
    _
  %s6 = ssub.s32 1, %s4
  %s7 = scalar_select 0, %s6, %s4
  $region1: #{tpu_custom_call.1} parent=0
    #allocation2 [shape = 'u8[4096]{0}', space=vmem, size = 0x1000, scoped, tag = 'output window, operand 0, single buffered']
    #allocation3 [shape = 's32[1]{0}', space=sflag, size = 0x4, scoped, tag = 'scoped memory for tpu_custom_call.1']
    %8 = vsyncpa [#allocation3], 0
    // Predicated region
    $region2: #{tpu_custom_call.1} parent=1 // pred_check
      _
    $region3: #{tpu_custom_call.1} parent=1 // pred_check_branch
      %10 = sbr.rel (0) target = $region5
    $region4: #{tpu_custom_call.1} parent=1 // pred_region
      _
    $region5: #{tpu_custom_call.1} parent=1 // pred_fallthru
      _
    // Predicated region
    $region6: #{tpu_custom_call.1} parent=1 // pred_check
      _
    $region7: #{tpu_custom_call.1} parent=1 // pred_check_branch
      %12 = sbr.rel (0) target = $region9
    $region8: #{tpu_custom_call.1} parent=1 // pred_region
      _
    $region9: #{tpu_custom_call.1} parent=1 // pred_fallthru
      _
    // Predicated region
    $region10: #{tpu_custom_call.1} parent=1 // pred_check
      _
    $region11: #{tpu_custom_call.1} parent=1 // pred_check_branch
      %14 = sbr.rel (0) target = $region13
    $region12: #{tpu_custom_call.1} parent=1 // pred_region
      _
    $region13: #{tpu_custom_call.1} parent=1 // pred_fallthru
      _
    %p15 = scmp.eq.s32.totalorder 0, 0
    // Predicated region
    $region14: #{tpu_custom_call.1} parent=1 // pred_check
      %p16 = pneg %p15
    $region15: #{tpu_custom_call.1} parent=1 // pred_check_branch
      %18 = sbr.rel (%p16) target = $region17
    $region16: #{tpu_custom_call.1} parent=1 // pred_region
      %v19 = vld [vmem:[%s2] sm:$0x1]
      %v21 = vlaneseq
      %v22 = vshrl.u32 %v21, 7
      %v23 = vsub.s32 0, %v22
      %v24 = vrot.slane %v19, %v23
      %vm26 = vcmask 130048
      %27 = vst.msk [vmem:[#allocation2] sm:$0xff] %vm26, %v24
    $region17: #{tpu_custom_call.1} parent=1 // pred_fallthru
      _
    %v28 = vld [vmem:[#allocation2] sm:$0xff]
    %v29 = vld [vmem:[%s0] sm:$0xff]
    %v30 = vld [vmem:[%s1] sm:$0xff]
    %v31 = vld [vmem:[%s1 + $0x8] sm:$0xff]
    %v32 = vld [vmem:[%s1 + $0x10] sm:$0xff]
    %v33 = vld [vmem:[%s1 + $0x18] sm:$0xff]
    %vm34 = vcmask 261120
    %v36 = vsel %vm34, %v29, 0
    %38 = vmatprep.subr.mxu0 0.0
    %39 = vmatpush1.msra.mxu0 %v30
    %40 = vmatprep.subr.mxu0 0.0
    %41 = vmatpush1.msra.mxu0 %v31
    %42 = vmatprep.subr.mxu0 0.0
    %43 = vmatpush1.msra.mxu0 %v32
    %44 = vmatprep.subr.mxu0 0.0
    %45 = vmatpush1.msra.mxu0 %v33
    %46 = vmatprep.subr.mxu0 0.0
    %47 = vmatpush1.msra.mxu0 0.0
    %48 = vmatprep.subr.mxu0 0.0
    %49 = vmatpush1.msra.mxu0 0.0
    %50 = vmatprep.subr.mxu0 0.0
    %51 = vmatpush1.msra.mxu0 0.0
    %52 = vmatprep.subr.mxu0 0.0
    %53 = vmatpush1.msra.mxu0 0.0
    %54 = vmatprep.subr.mxu0 0.0
    %55 = vmatpush1.msra.mxu0 0.0
    %56 = vmatprep.subr.mxu0 0.0
    %57 = vmatpush1.msra.mxu0 0.0
    %58 = vmatprep.subr.mxu0 0.0
    %59 = vmatpush1.msra.mxu0 0.0
    %60 = vmatprep.subr.mxu0 0.0
    %61 = vmatpush1.msra.mxu0 0.0
    %62 = vmatprep.subr.mxu0 0.0
    %63 = vmatpush1.msra.mxu0 0.0
    %64 = vmatprep.subr.mxu0 0.0
    %65 = vmatpush1.msra.mxu0 0.0
    %66 = vmatprep.subr.mxu0 0.0
    %67 = vmatpush1.msra.mxu0 0.0
    %68 = vmatprep.subr.mxu0 0.0
    %69 = vmatpush1.msra.mxu0 0.0
    %70 = vmatprep.subr.mxu0 0.0
    %71 = vmatpush1.msra.mxu0 0.0
    %72 = vmatprep.subr.mxu0 0.0
    %73 = vmatpush1.msra.mxu0 0.0
    %74 = vmatprep.subr.mxu0 0.0
    %75 = vmatpush1.msra.mxu0 0.0
    %76 = vmatprep.subr.mxu0 0.0
    %77 = vmatpush1.msra.mxu0 0.0
    %78 = vmatprep.subr.mxu0 0.0
    %79 = vmatpush1.msra.mxu0 0.0
    %80 = vmatprep.subr.mxu0 0.0
    %81 = vmatpush1.msra.mxu0 0.0
    %82 = vmatprep.subr.mxu0 0.0
    %83 = vmatpush1.msra.mxu0 0.0
    %84 = vmatprep.subr.mxu0 0.0
    %85 = vmatpush1.msra.mxu0 0.0
    %86 = vmatprep.subr.mxu0 0.0
    %87 = vmatpush1.msra.mxu0 0.0
    %88 = vmatprep.subr.mxu0 0.0
    %89 = vmatpush1.msra.mxu0 0.0
    %90 = vmatprep.subr.mxu0 0.0
    %91 = vmatpush1.msra.mxu0 0.0
    %92 = vmatprep.subr.mxu0 0.0
    %93 = vmatpush1.msra.mxu0 0.0
    %94 = vmatprep.subr.mxu0 0.0
    %95 = vmatpush1.msra.mxu0 0.0
    %96 = vmatprep.subr.mxu0 0.0
    %97 = vmatpush1.msra.mxu0 0.0
    %98 = vmatprep.subr.mxu0 0.0
    %99 = vmatpush1.msra.mxu0 0.0
    %100 = vmatprep.subr.mxu0 0.0
    %101 = vmatpush1.msra.mxu0 0.0
    %102 = vmatprep.mubr.f32.mxu0 0.0
    %103 = vmatmul.mubr.f32.gmra.mrb[0].mxu0 %v36
    %v104 = vpop.f32.mrb[0].mxu0
    %v105 = vadd.f32 0.0, %v104
    %v106 = vpop.f32.mrb[0].mxu0
    %107 = vdwg.mxu0
    %v108 = vadd.f32 %v28, %v105
    %vm109 = vcmask 130048
    %110 = vst.msk [vmem:[#allocation2] sm:$0xff] %vm109, %v108
    // Predicated region
    $region18: #{tpu_custom_call.1} parent=1 // pred_check
      _
    $region19: #{tpu_custom_call.1} parent=1 // pred_check_branch
      %112 = sbr.rel (0) target = $region21
    $region20: #{tpu_custom_call.1} parent=1 // pred_region
      %s114 = ssub.s32 128, 128
      %115 = vsyncadd [#allocation3], %s114
      %s117 = sshll.u32 [#allocation2], 4
      %s118 = int_to_ptr.vmem [resolvable:$true] %s117
      %120 = dma.vmem_to_hbm [thread:$0]  %s118, 128, %s3, [#allocation3]
    $region21: #{tpu_custom_call.1} parent=1 // pred_fallthru
      _
    // Predicated region
    $region22: #{tpu_custom_call.1} parent=1 // pred_check
      _
    $region23: #{tpu_custom_call.1} parent=1 // pred_check_branch
      %122 = sbr.rel (0) target = $region25
    $region24: #{tpu_custom_call.1} parent=1 // pred_region
      %123 = dma.done [#allocation3], 128
    $region25: #{tpu_custom_call.1} parent=1 // pred_fallthru
      _
    %124 = vsyncpa [#allocation3], 1

</llo_original>
